<compile_context>
chip_gen: v6e
topology: v6e:2x2x1
jax: 0.10.0
libtpu: 0.0.40
codegen_flags: <defaults>
</compile_context>

<pallas_src>
import functools

import numpy as np
import jax
import jax.numpy as jnp
from jax import lax
from jax.experimental import pallas as pl
from jax.experimental.pallas import tpu as pltpu

F32 = jnp.float32
BF16 = jnp.bfloat16
VMEM_SPEC = pl.BlockSpec(memory_space=pltpu.MemorySpace.VMEM)


def _round_up(n, m):
    return ((n + m - 1) // m) * m


def pad128(n):
    return _round_up(n, 128)


def _zero_map(nd, *_):
    return (0,) * nd


def _vmem_limit_bytes():
    # ~3/4 of physical VMEM: ~48 MiB on v7x (64 MiB), ~96 MiB on v5e/v6e (128 MiB).
    cap = 64 * 1024 * 1024
    try:
        info = pltpu.get_tpu_info()
        cap = int(getattr(info, "vmem_capacity_bytes", cap))
    except Exception:
        pass
    return int(min(max(cap * 3 // 4, 32 * 1024 * 1024), 100 * 1024 * 1024))


VMEM_LIMIT = _vmem_limit_bytes()


# ----------------------------------------------------------------------------
# Generic row-blocked single-kernel launcher (x plus resident consts).
# ----------------------------------------------------------------------------
def _row_blocked_call(kernel_fn, x2, consts, n_out, row_block=1024):
    M, K = x2.shape
    if M <= row_block:
        return pl.pallas_call(
            kernel_fn,
            out_shape=jax.ShapeDtypeStruct((M, n_out), F32),
            in_specs=[VMEM_SPEC] * (1 + len(consts)),
            out_specs=VMEM_SPEC,
            compiler_params=pltpu.CompilerParams(vmem_limit_bytes=VMEM_LIMIT),
        )(x2, *consts)
    RB = row_block
    Mp = _round_up(M, RB)
    xp = jnp.pad(x2, ((0, Mp - M), (0, 0))) if Mp != M else x2
    in_specs = [pl.BlockSpec((RB, K), lambda i: (i, 0))]
    in_specs += [pl.BlockSpec(c.shape, functools.partial(_zero_map, c.ndim))
                 for c in consts]
    out = pl.pallas_call(
        kernel_fn,
        out_shape=jax.ShapeDtypeStruct((Mp, n_out), F32),
        grid=(Mp // RB,),
        in_specs=in_specs,
        out_specs=pl.BlockSpec((RB, n_out), lambda i: (i, 0)),
        compiler_params=pltpu.CompilerParams(
            dimension_semantics=("parallel",),
            vmem_limit_bytes=VMEM_LIMIT),
    )(xp, *consts)
    return out[:M]


def _linear_kernel(act, has_bias, x_ref, w_ref, *rest):
    if has_bias:
        b_ref, o_ref = rest
    else:
        (o_ref,) = rest
    y = jnp.dot(x_ref[...].astype(BF16), w_ref[...], preferred_element_type=jnp.float32)
    if has_bias:
        y = y + b_ref[...]
    if act == "relu":
        y = jnp.maximum(y, 0.0)
    o_ref[...] = y.astype(o_ref.dtype)


def pl_linear(x, w, b=None, act=None):
    """x: (..., K); w: (K, N) bf16; b: (1, N) f32 or None -> (..., N) f32."""
    shp = x.shape
    x2 = x.reshape(-1, shp[-1])
    N = w.shape[1]
    has_bias = b is not None
    consts = [w] + ([b.reshape(1, N)] if has_bias else [])
    out = _row_blocked_call(functools.partial(_linear_kernel, act, has_bias),
                            x2, consts, N)
    return out.reshape(shp[:-1] + (N,))


def _tone_prenet_kernel(x_ref, tw_ref, tb_ref, w1_ref, b1_ref, w2_ref, b2_ref, o_ref):
    h = jnp.dot(x_ref[...].astype(BF16), tw_ref[...],
                preferred_element_type=jnp.float32) + tb_ref[...]
    h = jnp.maximum(jnp.dot(h.astype(BF16), w1_ref[...],
                            preferred_element_type=jnp.float32) + b1_ref[...], 0.0)
    h = jnp.maximum(jnp.dot(h.astype(BF16), w2_ref[...],
                            preferred_element_type=jnp.float32) + b2_ref[...], 0.0)
    o_ref[...] = h


def pl_tone_prenet(x, tone_w, tone_b, pre):
    # toneNchar2embedding linear + encoder Prenet (2 x Linear+ReLU) fused in one call.
    # TODO(synk): dropout is eval-mode identity.
    shp = x.shape
    x2 = x.reshape(-1, shp[-1])
    n_out = pre["w2"].shape[1]
    consts = [tone_w, tone_b, pre["w1"], pre["b1"], pre["w2"], pre["b2"]]
    out = _row_blocked_call(_tone_prenet_kernel, x2, consts, n_out)
    return out.reshape(shp[:-1] + (n_out,))


# ----------------------------------------------------------------------------
# Fused CBHG kernel: conv banks + BN + maxpool + 2 proj convs + residual
#                    + 4 highways + bidirectional GRU (+ optional final linear).
# Activations are (T*B, C), t-major rows (row = t*B + b).
# ----------------------------------------------------------------------------
def _cbhg_kernel(B, has_final, x_ref, wb_ref, bank_g_ref, bank_b_ref,
                 wp1_ref, p1g_ref, p1b_ref, wp2_ref, p2g_ref, p2b_ref,
                 whs_ref, bhs_ref, wts_ref, bts_ref, gw_ref, gb_ref, *rest):
    if has_final:
        wfin_ref, bfin_ref, o_ref, hwy_scr, outf_scr, outb_scr = rest
    else:
        o_ref, hwy_scr, outf_scr, outb_scr = rest

    TB, C = x_ref.shape
    T = TB // B
    KC = wb_ref.shape[1]
    K = wb_ref.shape[0] // C
    P1 = wp1_ref.shape[1]
    pad = K // 2

    x = x_ref[...]                                               # (T*B, C) f32
    xb = x.astype(BF16)

    # ---- all conv banks as ONE unfolded matmul (shift = B rows per tap), ReLU + BN ----
    zp = jnp.zeros((pad * B, C), BF16)
    xp = jnp.concatenate([zp, xb, zp], axis=0)                   # ((T+2*pad)*B, C)
    u = jnp.concatenate([xp[j * B:j * B + TB] for j in range(K)], axis=-1)   # (TB, K*C)
    y = jnp.dot(u, wb_ref[...], preferred_element_type=jnp.float32)
    y = jnp.maximum(y, 0.0) * bank_g_ref[...] + bank_b_ref[...]              # (TB, K*C)

    # ---- MaxPool1d(2, stride=1, pad=1)[:T]  => out[t] = max(y[t-1], y[t]) ----
    prev = jnp.concatenate(
        [jnp.full((B, KC), -jnp.inf, jnp.float32), y[:TB - B]], axis=0)
    y = jnp.maximum(y, prev).astype(BF16)

    # ---- projection conv 1 (k=3, pad=1) + ReLU + BN ----
    z1 = jnp.zeros((B, KC), BF16)
    yp = jnp.concatenate([z1, y, z1], axis=0)
    u1 = jnp.concatenate([yp[j * B:j * B + TB] for j in range(3)], axis=-1)  # (TB, 3KC)
    p1 = jnp.dot(u1, wp1_ref[...], preferred_element_type=jnp.float32)
    p1 = (jnp.maximum(p1, 0.0) * p1g_ref[...] + p1b_ref[...]).astype(BF16)   # (TB, P1)

    # ---- projection conv 2 (k=3, pad=1) + BN (no activation) ----
    z2 = jnp.zeros((B, P1), BF16)
    pp = jnp.concatenate([z2, p1, z2], axis=0)
    u2 = jnp.concatenate([pp[j * B:j * B + TB] for j in range(3)], axis=-1)  # (TB, 3P1)
    p2 = jnp.dot(u2, wp2_ref[...], preferred_element_type=jnp.float32)
    p2 = p2 * p2g_ref[...] + p2b_ref[...]                                    # (TB, C)

    # ---- residual + 4 highway layers (pre_highway skipped: dims match) ----
    h = p2 + x
    for i in range(4):
        hh = jnp.maximum(
            jnp.dot(h.astype(BF16), whs_ref[i],
                    preferred_element_type=jnp.float32) + bhs_ref[i], 0.0)
        tg = jax.nn.sigmoid(
            jnp.dot(h.astype(BF16), wts_ref[i],
                    preferred_element_type=jnp.float32) + bts_ref[i])
        h = hh * tg + h * (1.0 - tg)
    hwy_scr[...] = h                                                         # (TB, C)

    # ---- bidirectional GRU: fused [x | h] @ W_packed, batched (B, C) rows per step ----
    gw_fwd, gb_fwd = gw_ref[0], gb_ref[0]
    gw_bwd, gb_bwd = gw_ref[1], gb_ref[1]

    def gru_step(xt, hprev, w, b):
        xh = jnp.concatenate([xt, hprev], axis=-1)               # (B, 2C)
        g = jnp.dot(xh.astype(BF16), w, preferred_element_type=jnp.float32) + b
        gi = g[:, :3 * C]
        gh = g[:, 3 * C:]
        r = jax.nn.sigmoid(gi[:, :C] + gh[:, :C])
        z = jax.nn.sigmoid(gi[:, C:2 * C] + gh[:, C:2 * C])
        n = jnp.tanh(gi[:, 2 * C:] + r * gh[:, 2 * C:])
        return (1.0 - z) * n + z * hprev

    def body(t, carry):
        hf, hb = carry
        rf = pl.ds(t * B, B)
        rb = pl.ds((T - 1 - t) * B, B)
        hf = gru_step(hwy_scr[rf, :], hf, gw_fwd, gb_fwd)
        hb = gru_step(hwy_scr[rb, :], hb, gw_bwd, gb_bwd)
        outf_scr[rf, :] = hf
        outb_scr[rb, :] = hb
        return hf, hb

    h0 = jnp.zeros((B, C), jnp.float32)
    lax.fori_loop(0, T, body, (h0, h0))

    rnn_out = jnp.concatenate([outf_scr[...], outb_scr[...]], axis=-1)       # (TB, 2C)
    if has_final:
        o_ref[...] = jnp.dot(rnn_out.astype(BF16), wfin_ref[...],
                             preferred_element_type=jnp.float32) + bfin_ref[...]
    else:
        o_ref[...] = rnn_out


def pl_cbhg(x, p, final=None):
    """x: (B, T, C) -> (B, T, 2C) or (B, T, n_final) when `final=(w, b)` is fused."""
    B, T, C = x.shape
    x2 = jnp.transpose(x, (1, 0, 2)).reshape(T * B, C)
    n_out = 2 * C if final is None else final[0].shape[1]
    args = [x2, p["wb"], p["bank_g"], p["bank_b"],
            p["wp1"], p["p1_g"], p["p1_b"], p["wp2"], p["p2_g"], p["p2_b"],
            p["whs"], p["bhs"], p["wts"], p["bts"], p["gru_w"], p["gru_b"]]
    if final is not None:
        args += [final[0], final[1]]
    out = pl.pallas_call(
        functools.partial(_cbhg_kernel, B, final is not None),
        out_shape=jax.ShapeDtypeStruct((T * B, n_out), F32),
        in_specs=[VMEM_SPEC] * len(args),
        out_specs=VMEM_SPEC,
        scratch_shapes=[pltpu.VMEM((T * B, C), jnp.float32)] * 3,
        compiler_params=pltpu.CompilerParams(vmem_limit_bytes=VMEM_LIMIT),
    )(*args)
    return jnp.transpose(out.reshape(T, B, n_out), (1, 0, 2))


# ----------------------------------------------------------------------------
# Fused decoder kernel: U teacher-forced frames per grid step, weights resident,
# hidden states / context in persistent VMEM scratch, lane-dense outputs.
# ----------------------------------------------------------------------------
def _decoder_kernel(U, H,
                    prev_ref, pm_ref, memt_ref, v_ref, mask_ref,
                    l1w_ref, l1b_ref, l2w_ref, l2b_ref,
                    aw_ref, ab_ref, qw_ref, pdw_ref, pdb_ref,
                    d1w_ref, d1b_ref, d2w_ref, d2b_ref,
                    pmw_ref, pmb_ref,
                    out_ref, align_ref,
                    ah_scr, h1_scr, h2_scr, ctx_scr):
    @pl.when(pl.program_id(0) == 0)
    def _():
        ah_scr[...] = jnp.zeros_like(ah_scr)
        h1_scr[...] = jnp.zeros_like(h1_scr)
        h2_scr[...] = jnp.zeros_like(h2_scr)
        ctx_scr[...] = jnp.zeros_like(ctx_scr)

    def gru(x, h, w, b):
        g = jnp.dot(jnp.concatenate([x, h], axis=-1).astype(BF16), w,
                    preferred_element_type=jnp.float32) + b
        gi = g[:, :3 * H]
        gh = g[:, 3 * H:]
        r = jax.nn.sigmoid(gi[:, :H] + gh[:, :H])
        z = jax.nn.sigmoid(gi[:, H:2 * H] + gh[:, H:2 * H])
        n = jnp.tanh(gi[:, 2 * H:] + r * gh[:, 2 * H:])
        return (1.0 - z) * n + z * h

    pm = pm_ref[...]                                             # (B, Tp, 256) f32
    memt = memt_ref[...]                                         # (B, 256, Tp) bf16
    v = v_ref[...][None, :, :]                                   # (1, 1, 256)
    mask = mask_ref[...]                                         # (1, Tp)
    l1w, l1b = l1w_ref[...], l1b_ref[...]
    l2w, l2b = l2w_ref[...], l2b_ref[...]
    aw, ab = aw_ref[...], ab_ref[...]
    qw = qw_ref[...]
    pdw, pdb = pdw_ref[...], pdb_ref[...]
    d1w, d1b = d1w_ref[...], d1b_ref[...]
    d2w, d2b = d2w_ref[...], d2b_ref[...]
    pmw, pmb = pmw_ref[...], pmb_ref[...]

    a_h = ah_scr[...]
    h1 = h1_scr[...]
    h2 = h2_scr[...]
    ctx = ctx_scr[...]

    # statically unrolled chunk of U decoder frames (amortizes per-grid-step overhead)
    for u in range(U):
        # --- prenet on previous mel frame (zeros at t == 0, teacher forcing) ---
        x_prev = prev_ref[u]                                     # (B, mel_r_pad)
        h = jnp.maximum(jnp.dot(x_prev.astype(BF16), l1w,
                                preferred_element_type=jnp.float32) + l1b, 0.0)
        h = jnp.maximum(jnp.dot(h.astype(BF16), l2w,
                                preferred_element_type=jnp.float32) + l2b, 0.0)
        # --- attention RNN (fused [prenet | ctx | h] matmul) ---
        a_h = gru(jnp.concatenate([h, ctx], axis=-1), a_h, aw, ab)
        # --- Bahdanau attention: score -> masked softmax -> context (VPU reduce) ---
        pq = jnp.dot(a_h.astype(BF16), qw, preferred_element_type=jnp.float32)
        # TODO(synk): tanh kept f32 for v5e; bf16 would double EUP throughput on v6e/v7x.
        scr = jnp.sum(jnp.tanh(pm + pq[:, None, :]) * v, axis=-1) + mask     # (B, Tp)
        scr = scr - jnp.max(scr, axis=-1, keepdims=True)
        e = jnp.exp(scr)
        align = e * pl.reciprocal(jnp.sum(e, axis=-1, keepdims=True), approx=True)
        ctx = jnp.sum(align[:, None, :] * memt, axis=-1)                      # (B, 256)
        # --- project to decoder input, 2 decoder GRU cells with fused residuals ---
        dec_in = jnp.dot(jnp.concatenate([a_h, ctx], axis=-1).astype(BF16), pdw,
                         preferred_element_type=jnp.float32) + pdb
        h1 = gru(dec_in, h1, d1w, d1b)
        dec_in = h1 + dec_in
        h2 = gru(dec_in, h2, d2w, d2b)
        dec_in = h2 + dec_in
        out_ref[u] = jnp.dot(dec_in.astype(BF16), pmw,
                             preferred_element_type=jnp.float32) + pmb        # (B, 512)
        align_ref[u] = align

    ah_scr[...] = a_h
    h1_scr[...] = h1
    h2_scr[...] = h2
    ctx_scr[...] = ctx


def decoder_forward(encoder_outputs, targets, p, mel_dim, r):
    B, T_enc, _ = encoder_outputs.shape
    Tp = pad128(T_enc)                                           # lane-dense attention axis
    enc_pad = jnp.pad(encoder_outputs, ((0, 0), (0, Tp - T_enc), (0, 0)))
    processed_memory = pl_linear(enc_pad, p["memory_w"])         # no bias -> pads stay zero
    mem_t = jnp.transpose(enc_pad, (0, 2, 1)).astype(BF16)       # (B, 256, Tp)
    mask = jnp.where(jnp.arange(Tp) < T_enc, 0.0, -1e30).astype(F32)[None, :]

    mel_r = mel_dim * r
    mel_r_pad = p["l1_w"].shape[0]
    T_dec = targets.shape[1] // r
    dec_inputs = targets.reshape(B, T_dec, mel_r)
    # teacher forcing: step t consumes frame t-1 (zeros at t = 0), padded to 128 lanes
    prev = jnp.concatenate([jnp.zeros((B, 1, mel_r), F32),
                            dec_inputs[:, :T_dec - 1, :]], axis=1)
    prev = jnp.transpose(prev, (1, 0, 2))                        # (T_dec, B, mel_r)
    prev = jnp.pad(prev, ((0, 0), (0, 0), (0, mel_r_pad - mel_r)))

    U = 1
    for cand in range(min(8, T_dec), 0, -1):
        if T_dec % cand == 0:
            U = cand
            break

    resident = [processed_memory, mem_t, p["attn_v"], mask,
                p["l1_w"], p["l1_b"], p["l2_w"], p["l2_b"],
                p["attn_gru"]["w"], p["attn_gru"]["b"],
                p["attn_query_w"],
                p["proj_dec_w"], p["proj_dec_b"],
                p["dec_gru1"]["w"], p["dec_gru1"]["b"],
                p["dec_gru2"]["w"], p["dec_gru2"]["b"],
                p["proj_mel_w"], p["proj_mel_b"]]

    in_specs = [pl.BlockSpec((U, B, mel_r_pad), lambda s: (s, 0, 0))]
    in_specs += [pl.BlockSpec(a.shape, functools.partial(_zero_map, a.ndim))
                 for a in resident]

    out_pad, align = pl.pallas_call(
        functools.partial(_decoder_kernel, U, 256),
        out_shape=(jax.ShapeDtypeStruct((T_dec, B, mel_r_pad), F32),
                   jax.ShapeDtypeStruct((T_dec, B, Tp), F32)),
        grid=(T_dec // U,),
        in_specs=in_specs,
        out_specs=(pl.BlockSpec((U, B, mel_r_pad), lambda s: (s, 0, 0)),
                   pl.BlockSpec((U, B, Tp), lambda s: (s, 0, 0))),
        scratch_shapes=[pltpu.VMEM((B, 256), jnp.float32)] * 4,
        compiler_params=pltpu.CompilerParams(
            dimension_semantics=("arbitrary",),
            vmem_limit_bytes=VMEM_LIMIT),
    )(prev, *resident)

    outputs = jnp.transpose(out_pad[:, :, :mel_r], (1, 0, 2))    # (B, T_dec, mel_r)
    alignments = jnp.transpose(align[:, :, :T_enc], (1, 0, 2))   # (B, T_dec, T_enc)
    return outputs, alignments


# ----------------------------------------------------------------------------
# Full model forward
# ----------------------------------------------------------------------------
def tacotron_one_tones_forward(params, inputs, tones, targets):
    B = inputs.shape[0]
    emb = params["embedding"]
    # embedding lookups stay in XLA (gather); everything downstream is Pallas
    x = jnp.concatenate([jnp.take(emb, inputs, axis=0),
                         jnp.take(emb, tones, axis=0)], axis=-1)             # (B, T, 512)
    x = pl_tone_prenet(x, params["tone_w"], params["tone_b"],
                       params["enc_prenet"])                                 # (B, T, 128)
    encoder_outputs = pl_cbhg(x, params["enc_cbhg"])                         # (B, T, 256)
    mel_r_out, alignments = decoder_forward(
        encoder_outputs, targets, params["decoder"], params["mel_dim"], params["r"])
    mel_outputs = mel_r_out.reshape(B, -1, params["mel_dim"])                # (B, T_mel, mel)
    lin_pad = pl_cbhg(mel_outputs, params["post_cbhg"],
                      final=(params["last_w"], params["last_b"]))            # (B, T_mel, 1152)
    linear_outputs = lin_pad[..., :params["linear_dim"]]
    return mel_outputs, linear_outputs, alignments


# ----------------------------------------------------------------------------
# Deterministic parameter construction (packed / padded / bf16 kernel layout)
# ----------------------------------------------------------------------------
class KeyGen:
    def __init__(self, seed):
        self._key = jax.random.PRNGKey(seed)

    def __call__(self):
        self._key, k = jax.random.split(self._key)
        return k


def nrm(kg, shape, scale=0.1):
    return scale * jax.random.normal(kg(), shape, F32)


def make_gru_packed(kg, din, dh):
    # fused GRU weight: [x | h] @ W -> [gi | gh];  W[:din, :3H]=wih, W[din:, 3H:]=whh
    w = jnp.zeros((din + dh, 6 * dh), F32)
    w = w.at[:din, :3 * dh].set(nrm(kg, (din, 3 * dh)))
    w = w.at[din:, 3 * dh:].set(nrm(kg, (dh, 3 * dh)))
    b = jnp.concatenate([nrm(kg, (1, 3 * dh)), nrm(kg, (1, 3 * dh))], axis=-1)
    return {"w": w.astype(BF16), "b": b}


def make_prenet(kg, din, sizes=(256, 128)):
    return {"w1": nrm(kg, (din, sizes[0])).astype(BF16), "b1": nrm(kg, (1, sizes[0])),
            "w2": nrm(kg, (sizes[0], sizes[1])).astype(BF16), "b2": nrm(kg, (1, sizes[1]))}


def make_cbhg(kg, in_dim, K, projections):
    C = in_dim
    g_eps = float(1.0 / np.sqrt(1.0 + 1e-5))      # BN eval: gamma=1, mean=0, var=1
    # pack all conv banks into one (K*C, K*C) weight; bank k (width k) occupies the
    # column block [(k-1)*C, k*C) with its taps offset so every bank shares a single
    # width-K unfolded input window (matches Conv1d(padding=k//2)[:, :, :T]).
    wb = np.zeros((K * C, K * C), np.float32)
    for k in range(1, K + 1):
        w_k = np.asarray(nrm(kg, (k, C, C)))
        off = K // 2 - k // 2
        for i in range(k):
            wb[(off + i) * C:(off + i + 1) * C, (k - 1) * C:k * C] = w_k[i]
    P1, P2 = projections
    wp1 = nrm(kg, (3, K * C, P1)).reshape(3 * K * C, P1)
    wp2 = nrm(kg, (3, P1, P2)).reshape(3 * P1, P2)
    gf = make_gru_packed(kg, C, C)
    gb = make_gru_packed(kg, C, C)
    return {
        "wb": jnp.asarray(wb).astype(BF16),
        "bank_g": jnp.full((1, K * C), g_eps, F32),
        "bank_b": jnp.zeros((1, K * C), F32),
        "wp1": wp1.astype(BF16),
        "p1_g": jnp.full((1, P1), g_eps, F32),
        "p1_b": jnp.zeros((1, P1), F32),
        "wp2": wp2.astype(BF16),
        "p2_g": jnp.full((1, P2), g_eps, F32),
        "p2_b": jnp.zeros((1, P2), F32),
        "whs": nrm(kg, (4, C, C)).astype(BF16),
        "bhs": jnp.zeros((4, 1, C), F32),               # Highway H.bias = 0
        "wts": nrm(kg, (4, C, C)).astype(BF16),
        "bts": jnp.full((4, 1, C), -1.0, F32),          # Highway T.bias = -1
        "gru_w": jnp.stack([gf["w"], gb["w"]]),
        "gru_b": jnp.stack([gf["b"], gb["b"]]),
    }


def make_decoder(kg, in_dim, r):
    mel_r = in_dim * r
    mel_r_pad = pad128(mel_r)
    l1 = nrm(kg, (mel_r, 256))
    l1_w = jnp.zeros((mel_r_pad, 256), F32).at[:mel_r, :].set(l1).astype(BF16)
    pm = nrm(kg, (256, mel_r))
    pm_w = jnp.zeros((256, mel_r_pad), F32).at[:, :mel_r].set(pm).astype(BF16)
    pm_b = jnp.zeros((1, mel_r_pad), F32).at[:, :mel_r].set(nrm(kg, (1, mel_r)))
    return {
        "memory_w": nrm(kg, (256, 256)).astype(BF16),
        "l1_w": l1_w, "l1_b": nrm(kg, (1, 256)),
        "l2_w": nrm(kg, (256, 128)).astype(BF16), "l2_b": nrm(kg, (1, 128)),
        "attn_gru": make_gru_packed(kg, 256 + 128, 256),
        "attn_query_w": nrm(kg, (256, 256)).astype(BF16),
        "attn_v": nrm(kg, (1, 256)),
        "proj_dec_w": nrm(kg, (512, 256)).astype(BF16), "proj_dec_b": nrm(kg, (1, 256)),
        "dec_gru1": make_gru_packed(kg, 256, 256),
        "dec_gru2": make_gru_packed(kg, 256, 256),
        "proj_mel_w": pm_w, "proj_mel_b": pm_b,
    }


def make_params(kg, n_vocab, embedding_dim=256, mel_dim=80, linear_dim=1025, r=5):
    lin_pad = pad128(linear_dim)
    last_w = jnp.zeros((mel_dim * 2, lin_pad), F32)
    last_w = last_w.at[:, :linear_dim].set(nrm(kg, (mel_dim * 2, linear_dim))).astype(BF16)
    last_b = jnp.zeros((1, lin_pad), F32).at[:, :linear_dim].set(nrm(kg, (1, linear_dim)))
    return {
        "mel_dim": mel_dim, "r": r, "linear_dim": linear_dim,
        "embedding": 0.3 * jax.random.normal(kg(), (n_vocab, embedding_dim), F32),
        "tone_w": nrm(kg, (embedding_dim * 2, embedding_dim)).astype(BF16),
        "tone_b": nrm(kg, (1, embedding_dim)),
        "enc_prenet": make_prenet(kg, embedding_dim, (256, 128)),
        "enc_cbhg": make_cbhg(kg, 128, 16, [128, 128]),
        "decoder": make_decoder(kg, mel_dim, r),
        "post_cbhg": make_cbhg(kg, mel_dim, 8, [256, mel_dim]),
        "last_w": last_w, "last_b": last_b,
    }


# ----------------------------------------------------------------------------
if __name__ == "__main__":
    n_vocab = 20
    B, T_enc = 2, 8
    mel_dim, linear_dim, r = 80, 1025, 5
    T_dec = 2

    kg = KeyGen(0)
    params = make_params(kg, n_vocab, mel_dim=mel_dim, linear_dim=linear_dim, r=r)

    k1, k2, k3 = jax.random.split(jax.random.PRNGKey(0), 3)
    inputs = jax.random.randint(k1, (B, T_enc), 0, n_vocab, dtype=jnp.int32)
    tones = jax.random.randint(k2, (B, T_enc), 0, n_vocab, dtype=jnp.int32)
    targets = 0.5 * jax.random.normal(k3, (B, T_dec * r, mel_dim), F32)

    mel_out, lin_out, align = tacotron_one_tones_forward(params, inputs, tones, targets)
    jax.block_until_ready((mel_out, lin_out, align))

    assert mel_out.shape == (B, T_dec * r, mel_dim)
    assert lin_out.shape == (B, T_dec * r, linear_dim)
    assert align.shape == (B, T_dec, T_enc)
    assert bool(jnp.all(jnp.isfinite(mel_out))) and bool(jnp.all(jnp.isfinite(lin_out)))
    print("KERNEL_OK")
</pallas_src>

<mosaic_0001>
module attributes {stable_mosaic.version = 11 : i64} {
  func.func @_tone_prenet_kernel(%arg0: memref<16x512xf32, #tpu.memory_space<vmem>>, %arg1: memref<512x256xbf16, #tpu.memory_space<vmem>>, %arg2: memref<1x256xf32, #tpu.memory_space<vmem>>, %arg3: memref<256x256xbf16, #tpu.memory_space<vmem>>, %arg4: memref<1x256xf32, #tpu.memory_space<vmem>>, %arg5: memref<256x128xbf16, #tpu.memory_space<vmem>>, %arg6: memref<1x128xf32, #tpu.memory_space<vmem>>, %arg7: memref<16x128xf32, #tpu.memory_space<vmem>>) attributes {dimension_semantics = [], scalar_prefetch = 0 : i64, scratch_operands = 0 : i64, tpu.core_type = #tpu.core_type<tc>} {
    %c0 = arith.constant 0 : index
    %c0_0 = arith.constant 0 : index
    %0 = vector.load %arg0[%c0, %c0_0] : memref<16x512xf32, #tpu.memory_space<vmem>>, vector<16x512xf32>
    %1 = arith.truncf %0 : vector<16x512xf32> to vector<16x512xbf16>
    %c0_1 = arith.constant 0 : index
    %c0_2 = arith.constant 0 : index
    %2 = vector.load %arg1[%c0_1, %c0_2] : memref<512x256xbf16, #tpu.memory_space<vmem>>, vector<512x256xbf16>
    %cst = arith.constant dense<0.000000e+00> : vector<16x256xf32>
    %3 = tpu.matmul %1, %2, %cst {dimension_numbers = #tpu.dot_dimension_numbers<[1], [0], [0], [1], [0, 0, 1, 1], [], []>} : vector<16x512xbf16>, vector<512x256xbf16>, vector<16x256xf32> -> vector<16x256xf32>
    %c0_3 = arith.constant 0 : index
    %c0_4 = arith.constant 0 : index
    %4 = vector.load %arg2[%c0_3, %c0_4] : memref<1x256xf32, #tpu.memory_space<vmem>>, vector<1x256xf32>
    %5 = vector.broadcast %4 : vector<1x256xf32> to vector<16x256xf32>
    %6 = arith.addf %3, %5 : vector<16x256xf32>
    %7 = arith.truncf %6 : vector<16x256xf32> to vector<16x256xbf16>
    %c0_5 = arith.constant 0 : index
    %c0_6 = arith.constant 0 : index
    %8 = vector.load %arg3[%c0_5, %c0_6] : memref<256x256xbf16, #tpu.memory_space<vmem>>, vector<256x256xbf16>
    %cst_7 = arith.constant dense<0.000000e+00> : vector<16x256xf32>
    %9 = tpu.matmul %7, %8, %cst_7 {dimension_numbers = #tpu.dot_dimension_numbers<[1], [0], [0], [1], [0, 0, 1, 1], [], []>} : vector<16x256xbf16>, vector<256x256xbf16>, vector<16x256xf32> -> vector<16x256xf32>
    %c0_8 = arith.constant 0 : index
    %c0_9 = arith.constant 0 : index
    %10 = vector.load %arg4[%c0_8, %c0_9] : memref<1x256xf32, #tpu.memory_space<vmem>>, vector<1x256xf32>
    %11 = vector.broadcast %10 : vector<1x256xf32> to vector<16x256xf32>
    %12 = arith.addf %9, %11 : vector<16x256xf32>
    %cst_10 = arith.constant 0.000000e+00 : f32
    %13 = vector.broadcast %cst_10 : f32 to vector<16x256xf32>
    %14 = arith.maximumf %12, %13 : vector<16x256xf32>
    %15 = arith.truncf %14 : vector<16x256xf32> to vector<16x256xbf16>
    %c0_11 = arith.constant 0 : index
    %c0_12 = arith.constant 0 : index
    %16 = vector.load %arg5[%c0_11, %c0_12] : memref<256x128xbf16, #tpu.memory_space<vmem>>, vector<256x128xbf16>
    %cst_13 = arith.constant dense<0.000000e+00> : vector<16x128xf32>
    %17 = tpu.matmul %15, %16, %cst_13 {dimension_numbers = #tpu.dot_dimension_numbers<[1], [0], [0], [1], [0, 0, 1, 1], [], []>} : vector<16x256xbf16>, vector<256x128xbf16>, vector<16x128xf32> -> vector<16x128xf32>
    %c0_14 = arith.constant 0 : index
    %c0_15 = arith.constant 0 : index
    %18 = vector.load %arg6[%c0_14, %c0_15] : memref<1x128xf32, #tpu.memory_space<vmem>>, vector<1x128xf32>
    %19 = vector.broadcast %18 : vector<1x128xf32> to vector<16x128xf32>
    %20 = arith.addf %17, %19 : vector<16x128xf32>
    %cst_16 = arith.constant 0.000000e+00 : f32
    %21 = vector.broadcast %cst_16 : f32 to vector<16x128xf32>
    %22 = arith.maximumf %20, %21 : vector<16x128xf32>
    %c0_17 = arith.constant 0 : index
    %c0_18 = arith.constant 0 : index
    %23 = vector.load %arg7[%c0_17, %c0_18] : memref<16x128xf32, #tpu.memory_space<vmem>>, vector<16x128xf32>
    tpu.vector_store %arg7[%c0_17, %c0_18], %22 {strides = array<i32>} : memref<16x128xf32, #tpu.memory_space<vmem>>, vector<16x128xf32>,
    return
  }
}

</mosaic_0001>

<llo_original>
// kernel: tpu_custom_call.1
$region0: #{tpu_custom_call.1}
  #allocation0 [shape = 'u32[]', space=smem, size = 0x4, offset = 0x4, fixed_abs, tag = 'smem constant byte address 0x4 - core index']
  #allocation1 [shape = 'u32[144,128]{1,0:T(1,128)}', space=vmem, size = 0x12000, scoped, tag = 'internal scratch']
  %s0 = inlined_call_operand.hbm [shape: f32[16,512], index: 0, kind: input, shape index: {}]
  %s1 = inlined_call_operand.hbm [shape: bf16[512,256], index: 1, kind: input, shape index: {}]
  %s2 = inlined_call_operand.vmem [shape: f32[1,256], index: 2, kind: input, shape index: {}]
  %s3 = inlined_call_operand.hbm [shape: bf16[256,256], index: 3, kind: input, shape index: {}]
  %s4 = inlined_call_operand.vmem [shape: f32[1,256], index: 4, kind: input, shape index: {}]
  %s5 = inlined_call_operand.hbm [shape: bf16[256,128], index: 5, kind: input, shape index: {}]
  %s6 = inlined_call_operand.vmem [shape: f32[1,128], index: 6, kind: input, shape index: {}]
  %s7 = inlined_call_operand.hbm [shape: f32[16,128], index: 7, kind: output, shape index: {}]
  %s8 = sld [smem:[#allocation0]]
  $region54: #{tpu_custom_call.1} parent=0
    _
  %s10 = ssub.s32 1, %s8
  %s11 = scalar_select 0, %s10, %s8
  $region1: #{tpu_custom_call.1} parent=0
    #allocation2 [shape = 'u8[32768]{0}', space=vmem, size = 0x8000, scoped, tag = 'input window, operand 0, single buffered']
    #allocation3 [shape = 's32[1]{0}', space=sflag, size = 0x4, scoped, tag = 'scoped memory for tpu_custom_call.1']
    #allocation4 [shape = 's32[1]{0}', space=sflag, size = 0x4, scoped, tag = 'scoped memory for tpu_custom_call.1']
    #allocation5 [shape = 'u8[262144]{0}', space=vmem, size = 0x40000, scoped, tag = 'input window, operand 1, single buffered']
    #allocation6 [shape = 's32[1]{0}', space=sflag, size = 0x4, scoped, tag = 'scoped memory for tpu_custom_call.1']
    #allocation7 [shape = 'u8[131072]{0}', space=vmem, size = 0x20000, scoped, tag = 'input window, operand 3, single buffered']
    #allocation8 [shape = 'u8[65536]{0}', space=vmem, size = 0x10000, scoped, tag = 'input window, operand 5, single buffered']
    #allocation9 [shape = 's32[1]{0}', space=sflag, size = 0x4, scoped, tag = 'scoped memory for tpu_custom_call.1']
    #allocation10 [shape = 'u8[8192]{0}', space=vmem, size = 0x2000, scoped, tag = 'output window, operand 0, single buffered']
    %12 = vsyncpa [#allocation3], 0
    %13 = vsyncpa [#allocation6], 0
    %14 = vsyncpa [#allocation9], 0
    %15 = vsyncpa [#allocation4], 0
    // Predicated region
    $region2: #{tpu_custom_call.1} parent=1 // pred_check
      _
    $region3: #{tpu_custom_call.1} parent=1 // pred_check_branch
      %17 = sbr.rel (0) target = $region5
    $region4: #{tpu_custom_call.1} parent=1 // pred_region
      %s19 = ssub.s32 1024, 1024
      %20 = vsyncadd [#allocation3], %s19
      %s21 = sshll.u32 [#allocation2], 4
      %s22 = int_to_ptr.vmem [resolvable:$true] %s21
      %27 = dma.hbm_to_vmem [thread:$0]  %s0, 1024, %s22, [#allocation3], 512, 512, 32
    $region5: #{tpu_custom_call.1} parent=1 // pred_fallthru
      _
    // Predicated region
    $region6: #{tpu_custom_call.1} parent=1 // pred_check
      _
    $region7: #{tpu_custom_call.1} parent=1 // pred_check_branch
      %29 = sbr.rel (0) target = $region9
    $region8: #{tpu_custom_call.1} parent=1 // pred_region
      %s31 = ssub.s32 8192, 8192
      %32 = vsyncadd [#allocation6], %s31
      %s33 = sshll.u32 [#allocation5], 4
      %s34 = int_to_ptr.vmem [resolvable:$true] %s33
      %39 = dma.hbm_to_vmem [thread:$0]  %s1, 8192, %s34, [#allocation6], 128, 128, 8
    $region9: #{tpu_custom_call.1} parent=1 // pred_fallthru
      _
    // Predicated region
    $region10: #{tpu_custom_call.1} parent=1 // pred_check
      _
    $region11: #{tpu_custom_call.1} parent=1 // pred_check_branch
      %41 = sbr.rel (0) target = $region13
    $region12: #{tpu_custom_call.1} parent=1 // pred_region
      _
    $region13: #{tpu_custom_call.1} parent=1 // pred_fallthru
      _
    // Predicated region
    $region14: #{tpu_custom_call.1} parent=1 // pred_check
      _
    $region15: #{tpu_custom_call.1} parent=1 // pred_check_branch
      %43 = sbr.rel (0) target = $region17
    $region16: #{tpu_custom_call.1} parent=1 // pred_region
      %s45 = ssub.s32 4096, 4096
      %46 = vsyncadd [#allocation6], %s45
      %s47 = sshll.u32 [#allocation7], 4
      %s48 = int_to_ptr.vmem [resolvable:$true] %s47
      %53 = dma.hbm_to_vmem [thread:$0]  %s3, 4096, %s48, [#allocation6], 128, 128, 8
    $region17: #{tpu_custom_call.1} parent=1 // pred_fallthru
      _
    // Predicated region
    $region18: #{tpu_custom_call.1} parent=1 // pred_check
      _
    $region19: #{tpu_custom_call.1} parent=1 // pred_check_branch
      %55 = sbr.rel (0) target = $region21
    $region20: #{tpu_custom_call.1} parent=1 // pred_region
      _
    $region21: #{tpu_custom_call.1} parent=1 // pred_fallthru
      _
    // Predicated region
    $region22: #{tpu_custom_call.1} parent=1 // pred_check
      _
    $region23: #{tpu_custom_call.1} parent=1 // pred_check_branch
      %57 = sbr.rel (0) target = $region25
    $region24: #{tpu_custom_call.1} parent=1 // pred_region
      %s59 = ssub.s32 2048, 2048
      %60 = vsyncadd [#allocation9], %s59
      %s61 = sshll.u32 [#allocation8], 4
      %s62 = int_to_ptr.vmem [resolvable:$true] %s61
      %67 = dma.hbm_to_vmem [thread:$0]  %s5, 2048, %s62, [#allocation9], 64, 64, 4
    $region25: #{tpu_custom_call.1} parent=1 // pred_fallthru
      _
    // Predicated region
    $region26: #{tpu_custom_call.1} parent=1 // pred_check
      _
    $region27: #{tpu_custom_call.1} parent=1 // pred_check_branch
      %69 = sbr.rel (0) target = $region29
    $region28: #{tpu_custom_call.1} parent=1 // pred_region
      _
    $region29: #{tpu_custom_call.1} parent=1 // pred_fallthru
      _
    // Predicated region
    $region30: #{tpu_custom_call.1} parent=1 // pred_check
      _
    $region31: #{tpu_custom_call.1} parent=1 // pred_check_branch
      %71 = sbr.rel (0) target = $region33
    $region32: #{tpu_custom_call.1} parent=1 // pred_region
      %72 = dma.done [#allocation3], 1024
    $region33: #{tpu_custom_call.1} parent=1 // pred_fallthru
      _
    // Predicated region
    $region34: #{tpu_custom_call.1} parent=1 // pred_check
      _
    $region35: #{tpu_custom_call.1} parent=1 // pred_check_branch
      %74 = sbr.rel (0) target = $region37
    $region36: #{tpu_custom_call.1} parent=1 // pred_region
      %75 = dma.done [#allocation6], 8192
    $region37: #{tpu_custom_call.1} parent=1 // pred_fallthru
      _
    // Predicated region
    $region38: #{tpu_custom_call.1} parent=1 // pred_check
      _
    $region39: #{tpu_custom_call.1} parent=1 // pred_check_branch
      %77 = sbr.rel (0) target = $region41
    $region40: #{tpu_custom_call.1} parent=1 // pred_region
      %78 = dma.done [#allocation6], 4096
    $region41: #{tpu_custom_call.1} parent=1 // pred_fallthru
      _
    // Predicated region
    $region42: #{tpu_custom_call.1} parent=1 // pred_check
      _
    $region43: #{tpu_custom_call.1} parent=1 // pred_check_branch
      %80 = sbr.rel (0) target = $region45
    $region44: #{tpu_custom_call.1} parent=1 // pred_region
      %81 = dma.done [#allocation9], 2048
    $region45: #{tpu_custom_call.1} parent=1 // pred_fallthru
      _
    %v83 = vld [vmem:[#allocation2] sm:$0xff]
    %v84 = vld [vmem:[#allocation2 + $0x8] sm:$0xff]
    %v85 = vld [vmem:[#allocation2 + $0x10] sm:$0xff]
    %v86 = vld [vmem:[#allocation2 + $0x18] sm:$0xff]
    %v87 = vld [vmem:[#allocation2 + $0x20] sm:$0xff]
    %v88 = vld [vmem:[#allocation2 + $0x28] sm:$0xff]
    %v89 = vld [vmem:[#allocation2 + $0x30] sm:$0xff]
    %v90 = vld [vmem:[#allocation2 + $0x38] sm:$0xff]
    %v91 = vpack.c.bf16 %v87, %v83
    %v92 = vpack.c.bf16 %v88, %v84
    %v93 = vpack.c.bf16 %v89, %v85
    %v94 = vpack.c.bf16 %v90, %v86
    %v95 = vld [vmem:[#allocation5] sm:$0xff]
    %v96 = vld [vmem:[#allocation5 + $0x8] sm:$0xff]
    %v97 = vld [vmem:[#allocation5 + $0x10] sm:$0xff]
    %v98 = vld [vmem:[#allocation5 + $0x18] sm:$0xff]
    %v99 = vld [vmem:[#allocation5 + $0x20] sm:$0xff]
    %v100 = vld [vmem:[#allocation5 + $0x28] sm:$0xff]
    %v101 = vld [vmem:[#allocation5 + $0x30] sm:$0xff]
    %v102 = vld [vmem:[#allocation5 + $0x38] sm:$0xff]
    %v103 = vld [vmem:[#allocation5 + $0x40] sm:$0xff]
    %v104 = vld [vmem:[#allocation5 + $0x48] sm:$0xff]
    %v105 = vld [vmem:[#allocation5 + $0x50] sm:$0xff]
    %v106 = vld [vmem:[#allocation5 + $0x58] sm:$0xff]
    %v107 = vld [vmem:[#allocation5 + $0x60] sm:$0xff]
    %v108 = vld [vmem:[#allocation5 + $0x68] sm:$0xff]
    %v109 = vld [vmem:[#allocation5 + $0x70] sm:$0xff]
    %v110 = vld [vmem:[#allocation5 + $0x78] sm:$0xff]
    %v111 = vld [vmem:[#allocation5 + $0x80] sm:$0xff]
    %v112 = vld [vmem:[#allocation5 + $0x88] sm:$0xff]
    %v113 = vld [vmem:[#allocation5 + $0x90] sm:$0xff]
    %v114 = vld [vmem:[#allocation5 + $0x98] sm:$0xff]
    %v115 = vld [vmem:[#allocation5 + $0xa0] sm:$0xff]
    %v116 = vld [vmem:[#allocation5 + $0xa8] sm:$0xff]
    %v117 = vld [vmem:[#allocation5 + $0xb0] sm:$0xff]
    %v118 = vld [vmem:[#allocation5 + $0xb8] sm:$0xff]
    %v119 = vld [vmem:[#allocation5 + $0xc0] sm:$0xff]
    %v120 = vld [vmem:[#allocation5 + $0xc8] sm:$0xff]
    %v121 = vld [vmem:[#allocation5 + $0xd0] sm:$0xff]
    %v122 = vld [vmem:[#allocation5 + $0xd8] sm:$0xff]
    %v123 = vld [vmem:[#allocation5 + $0xe0] sm:$0xff]
    %v124 = vld [vmem:[#allocation5 + $0xe8] sm:$0xff]
    %v125 = vld [vmem:[#allocation5 + $0xf0] sm:$0xff]
    %v126 = vld [vmem:[#allocation5 + $0xf8] sm:$0xff]
    %v127 = vld [vmem:[#allocation5 + $0x100] sm:$0xff]
    %v128 = vld [vmem:[#allocation5 + $0x108] sm:$0xff]
    %v129 = vld [vmem:[#allocation5 + $0x110] sm:$0xff]
    %v130 = vld [vmem:[#allocation5 + $0x118] sm:$0xff]
    %v131 = vld [vmem:[#allocation5 + $0x120] sm:$0xff]
    %v132 = vld [vmem:[#allocation5 + $0x128] sm:$0xff]
    %v133 = vld [vmem:[#allocation5 + $0x130] sm:$0xff]
    %v134 = vld [vmem:[#allocation5 + $0x138] sm:$0xff]
    %v135 = vld [vmem:[#allocation5 + $0x140] sm:$0xff]
    %v136 = vld [vmem:[#allocation5 + $0x148] sm:$0xff]
    %v137 = vld [vmem:[#allocation5 + $0x150] sm:$0xff]
    %v138 = vld [vmem:[#allocation5 + $0x158] sm:$0xff]
    %v139 = vld [vmem:[#allocation5 + $0x160] sm:$0xff]
    %v140 = vld [vmem:[#allocation5 + $0x168] sm:$0xff]
    %v141 = vld [vmem:[#allocation5 + $0x170] sm:$0xff]
    %v142 = vld [vmem:[#allocation5 + $0x178] sm:$0xff]
    %v143 = vld [vmem:[#allocation5 + $0x180] sm:$0xff]
    %v144 = vld [vmem:[#allocation5 + $0x188] sm:$0xff]
    %v145 = vld [vmem:[#allocation5 + $0x190] sm:$0xff]
    %v146 = vld [vmem:[#allocation5 + $0x198] sm:$0xff]
    %v147 = vld [vmem:[#allocation5 + $0x1a0] sm:$0xff]
    %v148 = vld [vmem:[#allocation5 + $0x1a8] sm:$0xff]
    %v149 = vld [vmem:[#allocation5 + $0x1b0] sm:$0xff]
    %v150 = vld [vmem:[#allocation5 + $0x1b8] sm:$0xff]
    %v151 = vld [vmem:[#allocation5 + $0x1c0] sm:$0xff]
    %v152 = vld [vmem:[#allocation5 + $0x1c8] sm:$0xff]
    %v153 = vld [vmem:[#allocation5 + $0x1d0] sm:$0xff]
    %v154 = vld [vmem:[#allocation5 + $0x1d8] sm:$0xff]
    %v155 = vld [vmem:[#allocation5 + $0x1e0] sm:$0xff]
    %v156 = vld [vmem:[#allocation5 + $0x1e8] sm:$0xff]
    %v157 = vld [vmem:[#allocation5 + $0x1f0] sm:$0xff]
    %v158 = vld [vmem:[#allocation5 + $0x1f8] sm:$0xff]
    %v159 = vld [vmem:[%s2] sm:$0x3]
    %v161 = vlaneseq
    %v162 = vshrl.u32 %v161, 7
    %v163 = vsub.s32 0, %v162
    %v164 = vrot.slane %v159, %v163
    %v165 = vlaneseq
    %v166 = vshrl.u32 %v165, 7
    %v167 = vsub.s32 1, %v166
    %v168 = vrot.slane %v159, %v167
    %v235 = vunpack.c.l.b16 %v95
    %v236 = vunpack.c.h.b16 %v95
    %v237 = vunpack.c.l.b16 %v96
    %v238 = vunpack.c.h.b16 %v96
    %v239 = vunpack.c.l.b16 %v97
    %v240 = vunpack.c.h.b16 %v97
    %v241 = vunpack.c.l.b16 %v98
    %v242 = vunpack.c.h.b16 %v98
    %v243 = vunpack.c.l.b16 %v99
    %v244 = vunpack.c.h.b16 %v99
    %v245 = vunpack.c.l.b16 %v100
    %v246 = vunpack.c.h.b16 %v100
    %v247 = vunpack.c.l.b16 %v101
    %v248 = vunpack.c.h.b16 %v101
    %v249 = vunpack.c.l.b16 %v102
    %v250 = vunpack.c.h.b16 %v102
    %v251 = vunpack.c.l.b16 %v103
    %v252 = vunpack.c.h.b16 %v103
    %v253 = vunpack.c.l.b16 %v104
    %v254 = vunpack.c.h.b16 %v104
    %v255 = vunpack.c.l.b16 %v105
    %v256 = vunpack.c.h.b16 %v105
    %v257 = vunpack.c.l.b16 %v106
    %v258 = vunpack.c.h.b16 %v106
    %v259 = vunpack.c.l.b16 %v107
    %v260 = vunpack.c.h.b16 %v107
    %v261 = vunpack.c.l.b16 %v108
    %v262 = vunpack.c.h.b16 %v108
    %v263 = vunpack.c.l.b16 %v109
    %v264 = vunpack.c.h.b16 %v109
    %v265 = vunpack.c.l.b16 %v110
    %v266 = vunpack.c.h.b16 %v110
    %v267 = vunpack.c.l.b16 %v111
    %v268 = vunpack.c.h.b16 %v111
    %v269 = vunpack.c.l.b16 %v112
    %v270 = vunpack.c.h.b16 %v112
    %v271 = vunpack.c.l.b16 %v113
    %v272 = vunpack.c.h.b16 %v113
    %v273 = vunpack.c.l.b16 %v114
    %v274 = vunpack.c.h.b16 %v114
    %v275 = vunpack.c.l.b16 %v115
    %v276 = vunpack.c.h.b16 %v115
    %v277 = vunpack.c.l.b16 %v116
    %v278 = vunpack.c.h.b16 %v116
    %v279 = vunpack.c.l.b16 %v117
    %v280 = vunpack.c.h.b16 %v117
    %v281 = vunpack.c.l.b16 %v118
    %v282 = vunpack.c.h.b16 %v118
    %v283 = vunpack.c.l.b16 %v119
    %v284 = vunpack.c.h.b16 %v119
    %v285 = vunpack.c.l.b16 %v120
    %v286 = vunpack.c.h.b16 %v120
    %v287 = vunpack.c.l.b16 %v121
    %v288 = vunpack.c.h.b16 %v121
    %v289 = vunpack.c.l.b16 %v122
    %v290 = vunpack.c.h.b16 %v122
    %v291 = vunpack.c.l.b16 %v123
    %v292 = vunpack.c.h.b16 %v123
    %v293 = vunpack.c.l.b16 %v124
    %v294 = vunpack.c.h.b16 %v124
    %v295 = vunpack.c.l.b16 %v125
    %v296 = vunpack.c.h.b16 %v125
    %v297 = vunpack.c.l.b16 %v126
    %v298 = vunpack.c.h.b16 %v126
    %v299 = vunpack.c.l.b16 %v127
    %v300 = vunpack.c.h.b16 %v127
    %v301 = vunpack.c.l.b16 %v128
    %v302 = vunpack.c.h.b16 %v128
    %v303 = vunpack.c.l.b16 %v129
    %v304 = vunpack.c.h.b16 %v129
    %v305 = vunpack.c.l.b16 %v130
    %v306 = vunpack.c.h.b16 %v130
    %v307 = vunpack.c.l.b16 %v131
    %v308 = vunpack.c.h.b16 %v131
    %v309 = vunpack.c.l.b16 %v132
    %v310 = vunpack.c.h.b16 %v132
    %v311 = vunpack.c.l.b16 %v133
    %v312 = vunpack.c.h.b16 %v133
    %v313 = vunpack.c.l.b16 %v134
    %v314 = vunpack.c.h.b16 %v134
    %v315 = vunpack.c.l.b16 %v135
    %v316 = vunpack.c.h.b16 %v135
    %v317 = vunpack.c.l.b16 %v136
    %v318 = vunpack.c.h.b16 %v136
    %v319 = vunpack.c.l.b16 %v137
    %v320 = vunpack.c.h.b16 %v137
    %v321 = vunpack.c.l.b16 %v138
    %v322 = vunpack.c.h.b16 %v138
    %v323 = vunpack.c.l.b16 %v139
    %v324 = vunpack.c.h.b16 %v139
    %v325 = vunpack.c.l.b16 %v140
    %v326 = vunpack.c.h.b16 %v140
    %v327 = vunpack.c.l.b16 %v141
    %v328 = vunpack.c.h.b16 %v141
    %v329 = vunpack.c.l.b16 %v142
    %v330 = vunpack.c.h.b16 %v142
    %v331 = vunpack.c.l.b16 %v143
    %v332 = vunpack.c.h.b16 %v143
    %v333 = vunpack.c.l.b16 %v144
    %v334 = vunpack.c.h.b16 %v144
    %v335 = vunpack.c.l.b16 %v145
    %v336 = vunpack.c.h.b16 %v145
    %v337 = vunpack.c.l.b16 %v146
    %v338 = vunpack.c.h.b16 %v146
    %v339 = vunpack.c.l.b16 %v147
    %v340 = vunpack.c.h.b16 %v147
    %v341 = vunpack.c.l.b16 %v148
    %v342 = vunpack.c.h.b16 %v148
    %v343 = vunpack.c.l.b16 %v149
    %v344 = vunpack.c.h.b16 %v149
    %v345 = vunpack.c.l.b16 %v150
    %v346 = vunpack.c.h.b16 %v150
    %v347 = vunpack.c.l.b16 %v151
    %v348 = vunpack.c.h.b16 %v151
    %v349 = vunpack.c.l.b16 %v152
    %v350 = vunpack.c.h.b16 %v152
    %v351 = vunpack.c.l.b16 %v153
    %v352 = vunpack.c.h.b16 %v153
    %v353 = vunpack.c.l.b16 %v154
    %v354 = vunpack.c.h.b16 %v154
    %v355 = vunpack.c.l.b16 %v155
    %v356 = vunpack.c.h.b16 %v155
    %v357 = vunpack.c.l.b16 %v156
    %v358 = vunpack.c.h.b16 %v156
    %v359 = vunpack.c.l.b16 %v157
    %v360 = vunpack.c.h.b16 %v157
    %v361 = vunpack.c.l.b16 %v158
    %v362 = vunpack.c.h.b16 %v158
    %v363 = vpack.c.b16 %v237, %v235
    %v364 = vpack.c.b16 %v238, %v236
    %v365 = vpack.c.b16 %v241, %v239
    %v366 = vpack.c.b16 %v242, %v240
    %v367 = vpack.c.b16 %v245, %v243
    %v368 = vpack.c.b16 %v246, %v244
    %v369 = vpack.c.b16 %v249, %v247
    %v370 = vpack.c.b16 %v250, %v248
    %v371 = vpack.c.b16 %v253, %v251
    %v372 = vpack.c.b16 %v254, %v252
    %v373 = vpack.c.b16 %v257, %v255
    %v374 = vpack.c.b16 %v258, %v256
    %v375 = vpack.c.b16 %v261, %v259
    %v376 = vpack.c.b16 %v262, %v260
    %v377 = vpack.c.b16 %v265, %v263
    %v378 = vpack.c.b16 %v266, %v264
    %v379 = vpack.c.b16 %v269, %v267
    %v380 = vpack.c.b16 %v270, %v268
    %v381 = vpack.c.b16 %v273, %v271
    %v382 = vpack.c.b16 %v274, %v272
    %v383 = vpack.c.b16 %v277, %v275
    %v384 = vpack.c.b16 %v278, %v276
    %v385 = vpack.c.b16 %v281, %v279
    %v386 = vpack.c.b16 %v282, %v280
    %v387 = vpack.c.b16 %v285, %v283
    %v388 = vpack.c.b16 %v286, %v284
    %v389 = vpack.c.b16 %v289, %v287
    %v390 = vpack.c.b16 %v290, %v288
    %v391 = vpack.c.b16 %v293, %v291
    %v392 = vpack.c.b16 %v294, %v292
    %v393 = vpack.c.b16 %v297, %v295
    %v394 = vpack.c.b16 %v298, %v296
    %v395 = vpack.c.b16 %v301, %v299
    %v396 = vpack.c.b16 %v302, %v300
    %v397 = vpack.c.b16 %v305, %v303
    %v398 = vpack.c.b16 %v306, %v304
    %v399 = vpack.c.b16 %v309, %v307
    %v400 = vpack.c.b16 %v310, %v308
    %v401 = vpack.c.b16 %v313, %v311
    %v402 = vpack.c.b16 %v314, %v312
    %v403 = vpack.c.b16 %v317, %v315
    %v404 = vpack.c.b16 %v318, %v316
    %v405 = vpack.c.b16 %v321, %v319
    %v406 = vpack.c.b16 %v322, %v320
    %v407 = vpack.c.b16 %v325, %v323
    %v408 = vpack.c.b16 %v326, %v324
    %v409 = vpack.c.b16 %v329, %v327
    %v410 = vpack.c.b16 %v330, %v328
    %v411 = vpack.c.b16 %v333, %v331
    %v412 = vpack.c.b16 %v334, %v332
    %v413 = vpack.c.b16 %v337, %v335
    %v414 = vpack.c.b16 %v338, %v336
    %v415 = vpack.c.b16 %v341, %v339
    %v416 = vpack.c.b16 %v342, %v340
    %v417 = vpack.c.b16 %v345, %v343
    %v418 = vpack.c.b16 %v346, %v344
    %v419 = vpack.c.b16 %v349, %v347
    %v420 = vpack.c.b16 %v350, %v348
    %v421 = vpack.c.b16 %v353, %v351
    %v422 = vpack.c.b16 %v354, %v352
    %v423 = vpack.c.b16 %v357, %v355
    %v424 = vpack.c.b16 %v358, %v356
    %v425 = vpack.c.b16 %v361, %v359
    %v426 = vpack.c.b16 %v362, %v360
    %491 = vmatprep.subr.bf16.mxu0 %v378
    %492 = vmatpush1.bf16.msra.mxu0 %v377
    %493 = vmatprep.subr.bf16.mxu0 %v376
    %494 = vmatpush1.bf16.msra.mxu0 %v375
    %495 = vmatprep.subr.bf16.mxu0 %v374
    %496 = vmatpush1.bf16.msra.mxu0 %v373
    %497 = vmatprep.subr.bf16.mxu0 %v372
    %498 = vmatpush1.bf16.msra.mxu0 %v371
    %499 = vmatprep.subr.bf16.mxu0 %v370
    %500 = vmatpush1.bf16.msra.mxu0 %v369
    %501 = vmatprep.subr.bf16.mxu0 %v368
    %502 = vmatpush1.bf16.msra.mxu0 %v367
    %503 = vmatprep.subr.bf16.mxu0 %v366
    %504 = vmatpush1.bf16.msra.mxu0 %v365
    %505 = vmatprep.subr.bf16.mxu0 %v364
    %506 = vmatpush1.bf16.msra.mxu0 %v363
    %507 = vmatprep.subr.bf16.mxu0 %v394
    %508 = vmatpush2.bf16.msra.mxu0 %v393
    %509 = vmatprep.subr.bf16.mxu0 %v392
    %510 = vmatpush2.bf16.msra.mxu0 %v391
    %511 = vmatprep.subr.bf16.mxu0 %v390
    %512 = vmatpush2.bf16.msra.mxu0 %v389
    %513 = vmatprep.subr.bf16.mxu0 %v388
    %514 = vmatpush2.bf16.msra.mxu0 %v387
    %515 = vmatprep.subr.bf16.mxu0 %v386
    %516 = vmatpush2.bf16.msra.mxu0 %v385
    %517 = vmatprep.subr.bf16.mxu0 %v384
    %518 = vmatpush2.bf16.msra.mxu0 %v383
    %519 = vmatprep.subr.bf16.mxu0 %v382
    %520 = vmatpush2.bf16.msra.mxu0 %v381
    %521 = vmatprep.subr.bf16.mxu0 %v380
    %522 = vmatpush2.bf16.msra.mxu0 %v379
    %523 = vmatprep.mubr.bf16.mxu0 %v92
    %524 = vmatmul.mubr.bf16.gmra.mxu0 %v91
    %v525 = vpop.f32.mrf.mxu0
    %v526 = vadd.f32 %v164, %v525
    %v527 = vpop.f32.mrf.mxu0
    %v528 = vadd.f32 %v168, %v527
    %v529 = vpop.f32.mrf.mxu0
    %v530 = vadd.f32 %v164, %v529
    %v531 = vpop.f32.mrf.mxu0
    %v532 = vadd.f32 %v168, %v531
    %533 = vdwg.mxu0
    %534 = vmatprep.subr.bf16.mxu0 %v410
    %535 = vmatpush1.bf16.msra.mxu0 %v409
    %536 = vmatprep.subr.bf16.mxu0 %v408
    %537 = vmatpush1.bf16.msra.mxu0 %v407
    %538 = vmatprep.subr.bf16.mxu0 %v406
    %539 = vmatpush1.bf16.msra.mxu0 %v405
    %540 = vmatprep.subr.bf16.mxu0 %v404
    %541 = vmatpush1.bf16.msra.mxu0 %v403
    %542 = vmatprep.subr.bf16.mxu0 %v402
    %543 = vmatpush1.bf16.msra.mxu0 %v401
    %544 = vmatprep.subr.bf16.mxu0 %v400
    %545 = vmatpush1.bf16.msra.mxu0 %v399
    %546 = vmatprep.subr.bf16.mxu0 %v398
    %547 = vmatpush1.bf16.msra.mxu0 %v397
    %548 = vmatprep.subr.bf16.mxu0 %v396
    %549 = vmatpush1.bf16.msra.mxu0 %v395
    %550 = vmatprep.subr.bf16.mxu0 %v426
    %551 = vmatpush2.bf16.msra.mxu0 %v425
    %552 = vmatprep.subr.bf16.mxu0 %v424
    %553 = vmatpush2.bf16.msra.mxu0 %v423
    %554 = vmatprep.subr.bf16.mxu0 %v422
    %555 = vmatpush2.bf16.msra.mxu0 %v421
    %556 = vmatprep.subr.bf16.mxu0 %v420
    %557 = vmatpush2.bf16.msra.mxu0 %v419
    %558 = vmatprep.subr.bf16.mxu0 %v418
    %559 = vmatpush2.bf16.msra.mxu0 %v417
    %560 = vmatprep.subr.bf16.mxu0 %v416
    %561 = vmatpush2.bf16.msra.mxu0 %v415
    %562 = vmatprep.subr.bf16.mxu0 %v414
    %563 = vmatpush2.bf16.msra.mxu0 %v413
    %564 = vmatprep.subr.bf16.mxu0 %v412
    %565 = vmatpush2.bf16.msra.mxu0 %v411
    %566 = vmatprep.mubr.bf16.mxu0 %v94
    %567 = vmatmul.mubr.bf16.gmra.mxu0 %v93
    %v568 = vpop.f32.mrf.mxu0
    %v569 = vadd.f32 %v526, %v568
    %v570 = vpop.f32.mrf.mxu0
    %v571 = vadd.f32 %v528, %v570
    %v572 = vpop.f32.mrf.mxu0
    %v573 = vadd.f32 %v530, %v572
    %v574 = vpop.f32.mrf.mxu0
    %v575 = vadd.f32 %v532, %v574
    %576 = vdwg.mxu0
    %v577 = vpack.c.bf16 %v573, %v569
    %v578 = vpack.c.bf16 %v575, %v571
    %v579 = vld [vmem:[#allocation7] sm:$0xff]
    %v580 = vld [vmem:[#allocation7 + $0x8] sm:$0xff]
    %v581 = vld [vmem:[#allocation7 + $0x10] sm:$0xff]
    %v582 = vld [vmem:[#allocation7 + $0x18] sm:$0xff]
    %v583 = vld [vmem:[#allocation7 + $0x20] sm:$0xff]
    %v584 = vld [vmem:[#allocation7 + $0x28] sm:$0xff]
    %v585 = vld [vmem:[#allocation7 + $0x30] sm:$0xff]
    %v586 = vld [vmem:[#allocation7 + $0x38] sm:$0xff]
    %v587 = vld [vmem:[#allocation7 + $0x40] sm:$0xff]
    %v588 = vld [vmem:[#allocation7 + $0x48] sm:$0xff]
    %v589 = vld [vmem:[#allocation7 + $0x50] sm:$0xff]
    %v590 = vld [vmem:[#allocation7 + $0x58] sm:$0xff]
    %v591 = vld [vmem:[#allocation7 + $0x60] sm:$0xff]
    %v592 = vld [vmem:[#allocation7 + $0x68] sm:$0xff]
    %v593 = vld [vmem:[#allocation7 + $0x70] sm:$0xff]
    %v594 = vld [vmem:[#allocation7 + $0x78] sm:$0xff]
    %v595 = vld [vmem:[#allocation7 + $0x80] sm:$0xff]
    %v596 = vld [vmem:[#allocation7 + $0x88] sm:$0xff]
    %v597 = vld [vmem:[#allocation7 + $0x90] sm:$0xff]
    %v598 = vld [vmem:[#allocation7 + $0x98] sm:$0xff]
    %v599 = vld [vmem:[#allocation7 + $0xa0] sm:$0xff]
    %v600 = vld [vmem:[#allocation7 + $0xa8] sm:$0xff]
    %v601 = vld [vmem:[#allocation7 + $0xb0] sm:$0xff]
    %v602 = vld [vmem:[#allocation7 + $0xb8] sm:$0xff]
    %v603 = vld [vmem:[#allocation7 + $0xc0] sm:$0xff]
    %v604 = vld [vmem:[#allocation7 + $0xc8] sm:$0xff]
    %v605 = vld [vmem:[#allocation7 + $0xd0] sm:$0xff]
    %v606 = vld [vmem:[#allocation7 + $0xd8] sm:$0xff]
    %v607 = vld [vmem:[#allocation7 + $0xe0] sm:$0xff]
    %v608 = vld [vmem:[#allocation7 + $0xe8] sm:$0xff]
    %v609 = vld [vmem:[#allocation7 + $0xf0] sm:$0xff]
    %v610 = vld [vmem:[#allocation7 + $0xf8] sm:$0xff]
    %v611 = vld [vmem:[%s4] sm:$0x3]
    %v613 = vlaneseq
    %v614 = vshrl.u32 %v613, 7
    %v615 = vsub.s32 0, %v614
    %v616 = vrot.slane %v611, %v615
    %v617 = vlaneseq
    %v618 = vshrl.u32 %v617, 7
    %v619 = vsub.s32 1, %v618
    %v620 = vrot.slane %v611, %v619
    %v655 = vunpack.c.l.b16 %v579
    %v656 = vunpack.c.h.b16 %v579
    %v657 = vunpack.c.l.b16 %v580
    %v658 = vunpack.c.h.b16 %v580
    %v659 = vunpack.c.l.b16 %v581
    %v660 = vunpack.c.h.b16 %v581
    %v661 = vunpack.c.l.b16 %v582
    %v662 = vunpack.c.h.b16 %v582
    %v663 = vunpack.c.l.b16 %v583
    %v664 = vunpack.c.h.b16 %v583
    %v665 = vunpack.c.l.b16 %v584
    %v666 = vunpack.c.h.b16 %v584
    %v667 = vunpack.c.l.b16 %v585
    %v668 = vunpack.c.h.b16 %v585
    %v669 = vunpack.c.l.b16 %v586
    %v670 = vunpack.c.h.b16 %v586
    %v671 = vunpack.c.l.b16 %v587
    %v672 = vunpack.c.h.b16 %v587
    %v673 = vunpack.c.l.b16 %v588
    %v674 = vunpack.c.h.b16 %v588
    %v675 = vunpack.c.l.b16 %v589
    %v676 = vunpack.c.h.b16 %v589
    %v677 = vunpack.c.l.b16 %v590
    %v678 = vunpack.c.h.b16 %v590
    %v679 = vunpack.c.l.b16 %v591
    %v680 = vunpack.c.h.b16 %v591
    %v681 = vunpack.c.l.b16 %v592
    %v682 = vunpack.c.h.b16 %v592
    %v683 = vunpack.c.l.b16 %v593
    %v684 = vunpack.c.h.b16 %v593
    %v685 = vunpack.c.l.b16 %v594
    %v686 = vunpack.c.h.b16 %v594
    %v687 = vunpack.c.l.b16 %v595
    %v688 = vunpack.c.h.b16 %v595
    %v689 = vunpack.c.l.b16 %v596
    %v690 = vunpack.c.h.b16 %v596
    %v691 = vunpack.c.l.b16 %v597
    %v692 = vunpack.c.h.b16 %v597
    %v693 = vunpack.c.l.b16 %v598
    %v694 = vunpack.c.h.b16 %v598
    %v695 = vunpack.c.l.b16 %v599
    %v696 = vunpack.c.h.b16 %v599
    %v697 = vunpack.c.l.b16 %v600
    %v698 = vunpack.c.h.b16 %v600
    %v699 = vunpack.c.l.b16 %v601
    %v700 = vunpack.c.h.b16 %v601
    %v701 = vunpack.c.l.b16 %v602
    %v702 = vunpack.c.h.b16 %v602
    %v703 = vunpack.c.l.b16 %v603
    %v704 = vunpack.c.h.b16 %v603
    %v705 = vunpack.c.l.b16 %v604
    %v706 = vunpack.c.h.b16 %v604
    %v707 = vunpack.c.l.b16 %v605
    %v708 = vunpack.c.h.b16 %v605
    %v709 = vunpack.c.l.b16 %v606
    %v710 = vunpack.c.h.b16 %v606
    %v711 = vunpack.c.l.b16 %v607
    %v712 = vunpack.c.h.b16 %v607
    %v713 = vunpack.c.l.b16 %v608
    %v714 = vunpack.c.h.b16 %v608
    %v715 = vunpack.c.l.b16 %v609
    %v716 = vunpack.c.h.b16 %v609
    %v717 = vunpack.c.l.b16 %v610
    %v718 = vunpack.c.h.b16 %v610
    %v719 = vpack.c.b16 %v657, %v655
    %v720 = vpack.c.b16 %v658, %v656
    %v721 = vpack.c.b16 %v661, %v659
    %v722 = vpack.c.b16 %v662, %v660
    %v723 = vpack.c.b16 %v665, %v663
    %v724 = vpack.c.b16 %v666, %v664
    %v725 = vpack.c.b16 %v669, %v667
    %v726 = vpack.c.b16 %v670, %v668
    %v727 = vpack.c.b16 %v673, %v671
    %v728 = vpack.c.b16 %v674, %v672
    %v729 = vpack.c.b16 %v677, %v675
    %v730 = vpack.c.b16 %v678, %v676
    %v731 = vpack.c.b16 %v681, %v679
    %v732 = vpack.c.b16 %v682, %v680
    %v733 = vpack.c.b16 %v685, %v683
    %v734 = vpack.c.b16 %v686, %v684
    %v735 = vpack.c.b16 %v689, %v687
    %v736 = vpack.c.b16 %v690, %v688
    %v737 = vpack.c.b16 %v693, %v691
    %v738 = vpack.c.b16 %v694, %v692
    %v739 = vpack.c.b16 %v697, %v695
    %v740 = vpack.c.b16 %v698, %v696
    %v741 = vpack.c.b16 %v701, %v699
    %v742 = vpack.c.b16 %v702, %v700
    %v743 = vpack.c.b16 %v705, %v703
    %v744 = vpack.c.b16 %v706, %v704
    %v745 = vpack.c.b16 %v709, %v707
    %v746 = vpack.c.b16 %v710, %v708
    %v747 = vpack.c.b16 %v713, %v711
    %v748 = vpack.c.b16 %v714, %v712
    %v749 = vpack.c.b16 %v717, %v715
    %v750 = vpack.c.b16 %v718, %v716
    %783 = vmatprep.subr.bf16.mxu0 %v734
    %784 = vmatpush1.bf16.msra.mxu0 %v733
    %785 = vmatprep.subr.bf16.mxu0 %v732
    %786 = vmatpush1.bf16.msra.mxu0 %v731
    %787 = vmatprep.subr.bf16.mxu0 %v730
    %788 = vmatpush1.bf16.msra.mxu0 %v729
    %789 = vmatprep.subr.bf16.mxu0 %v728
    %790 = vmatpush1.bf16.msra.mxu0 %v727
    %791 = vmatprep.subr.bf16.mxu0 %v726
    %792 = vmatpush1.bf16.msra.mxu0 %v725
    %793 = vmatprep.subr.bf16.mxu0 %v724
    %794 = vmatpush1.bf16.msra.mxu0 %v723
    %795 = vmatprep.subr.bf16.mxu0 %v722
    %796 = vmatpush1.bf16.msra.mxu0 %v721
    %797 = vmatprep.subr.bf16.mxu0 %v720
    %798 = vmatpush1.bf16.msra.mxu0 %v719
    %799 = vmatprep.subr.bf16.mxu0 %v750
    %800 = vmatpush2.bf16.msra.mxu0 %v749
    %801 = vmatprep.subr.bf16.mxu0 %v748
    %802 = vmatpush2.bf16.msra.mxu0 %v747
    %803 = vmatprep.subr.bf16.mxu0 %v746
    %804 = vmatpush2.bf16.msra.mxu0 %v745
    %805 = vmatprep.subr.bf16.mxu0 %v744
    %806 = vmatpush2.bf16.msra.mxu0 %v743
    %807 = vmatprep.subr.bf16.mxu0 %v742
    %808 = vmatpush2.bf16.msra.mxu0 %v741
    %809 = vmatprep.subr.bf16.mxu0 %v740
    %810 = vmatpush2.bf16.msra.mxu0 %v739
    %811 = vmatprep.subr.bf16.mxu0 %v738
    %812 = vmatpush2.bf16.msra.mxu0 %v737
    %813 = vmatprep.subr.bf16.mxu0 %v736
    %814 = vmatpush2.bf16.msra.mxu0 %v735
    %815 = vmatprep.mubr.bf16.mxu0 %v578
    %816 = vmatmul.mubr.bf16.gmra.mxu0 %v577
    %v817 = vpop.f32.mrf.mxu0
    %v818 = vadd.f32 %v616, %v817
    %v819 = vpop.f32.mrf.mxu0
    %v820 = vadd.f32 %v620, %v819
    %v821 = vpop.f32.mrf.mxu0
    %v822 = vadd.f32 %v616, %v821
    %v823 = vpop.f32.mrf.mxu0
    %v824 = vadd.f32 %v620, %v823
    %825 = vdwg.mxu0
    %v826 = vmax.f32 %v818, 0.0
    %v827 = vmax.f32 %v820, 0.0
    %v828 = vmax.f32 %v822, 0.0
    %v829 = vmax.f32 %v824, 0.0
    %v830 = vpack.c.bf16 %v828, %v826
    %v831 = vpack.c.bf16 %v829, %v827
    %v832 = vld [vmem:[#allocation8] sm:$0xf]
    %v833 = vld [vmem:[#allocation8 + $0x4] sm:$0xf]
    %v834 = vld [vmem:[#allocation8 + $0x8] sm:$0xf]
    %v835 = vld [vmem:[#allocation8 + $0xc] sm:$0xf]
    %v836 = vld [vmem:[#allocation8 + $0x10] sm:$0xf]
    %v837 = vld [vmem:[#allocation8 + $0x14] sm:$0xf]
    %v838 = vld [vmem:[#allocation8 + $0x18] sm:$0xf]
    %v839 = vld [vmem:[#allocation8 + $0x1c] sm:$0xf]
    %v840 = vld [vmem:[#allocation8 + $0x20] sm:$0xf]
    %v841 = vld [vmem:[#allocation8 + $0x24] sm:$0xf]
    %v842 = vld [vmem:[#allocation8 + $0x28] sm:$0xf]
    %v843 = vld [vmem:[#allocation8 + $0x2c] sm:$0xf]
    %v844 = vld [vmem:[#allocation8 + $0x30] sm:$0xf]
    %v845 = vld [vmem:[#allocation8 + $0x34] sm:$0xf]
    %v846 = vld [vmem:[#allocation8 + $0x38] sm:$0xf]
    %v847 = vld [vmem:[#allocation8 + $0x3c] sm:$0xf]
    %v848 = vld [vmem:[#allocation8 + $0x40] sm:$0xf]
    %v849 = vld [vmem:[#allocation8 + $0x44] sm:$0xf]
    %v850 = vld [vmem:[#allocation8 + $0x48] sm:$0xf]
    %v851 = vld [vmem:[#allocation8 + $0x4c] sm:$0xf]
    %v852 = vld [vmem:[#allocation8 + $0x50] sm:$0xf]
    %v853 = vld [vmem:[#allocation8 + $0x54] sm:$0xf]
    %v854 = vld [vmem:[#allocation8 + $0x58] sm:$0xf]
    %v855 = vld [vmem:[#allocation8 + $0x5c] sm:$0xf]
    %v856 = vld [vmem:[#allocation8 + $0x60] sm:$0xf]
    %v857 = vld [vmem:[#allocation8 + $0x64] sm:$0xf]
    %v858 = vld [vmem:[#allocation8 + $0x68] sm:$0xf]
    %v859 = vld [vmem:[#allocation8 + $0x6c] sm:$0xf]
    %v860 = vld [vmem:[#allocation8 + $0x70] sm:$0xf]
    %v861 = vld [vmem:[#allocation8 + $0x74] sm:$0xf]
    %v862 = vld [vmem:[#allocation8 + $0x78] sm:$0xf]
    %v863 = vld [vmem:[#allocation8 + $0x7c] sm:$0xf]
    %v864 = vld [vmem:[%s6] sm:$0x1]
    %v866 = vlaneseq
    %v867 = vshrl.u32 %v866, 7
    %v868 = vsub.s32 0, %v867
    %v869 = vrot.slane %v864, %v868
    %v903 = vunpack.c.l.b16 %v832
    %v904 = vunpack.c.l.b16 %v833
    %v905 = vunpack.c.l.b16 %v834
    %v906 = vunpack.c.l.b16 %v835
    %v907 = vunpack.c.l.b16 %v836
    %v908 = vunpack.c.l.b16 %v837
    %v909 = vunpack.c.l.b16 %v838
    %v910 = vunpack.c.l.b16 %v839
    %v911 = vunpack.c.l.b16 %v840
    %v912 = vunpack.c.l.b16 %v841
    %v913 = vunpack.c.l.b16 %v842
    %v914 = vunpack.c.l.b16 %v843
    %v915 = vunpack.c.l.b16 %v844
    %v916 = vunpack.c.l.b16 %v845
    %v917 = vunpack.c.l.b16 %v846
    %v918 = vunpack.c.l.b16 %v847
    %v919 = vunpack.c.l.b16 %v848
    %v920 = vunpack.c.l.b16 %v849
    %v921 = vunpack.c.l.b16 %v850
    %v922 = vunpack.c.l.b16 %v851
    %v923 = vunpack.c.l.b16 %v852
    %v924 = vunpack.c.l.b16 %v853
    %v925 = vunpack.c.l.b16 %v854
    %v926 = vunpack.c.l.b16 %v855
    %v927 = vunpack.c.l.b16 %v856
    %v928 = vunpack.c.l.b16 %v857
    %v929 = vunpack.c.l.b16 %v858
    %v930 = vunpack.c.l.b16 %v859
    %v931 = vunpack.c.l.b16 %v860
    %v932 = vunpack.c.l.b16 %v861
    %v933 = vunpack.c.l.b16 %v862
    %v934 = vunpack.c.l.b16 %v863
    %v935 = vpack.c.b16 %v904, %v903
    %v936 = vpack.c.b16 %v906, %v905
    %v937 = vpack.c.b16 %v908, %v907
    %v938 = vpack.c.b16 %v910, %v909
    %v939 = vpack.c.b16 %v912, %v911
    %v940 = vpack.c.b16 %v914, %v913
    %v941 = vpack.c.b16 %v916, %v915
    %v942 = vpack.c.b16 %v918, %v917
    %v943 = vpack.c.b16 %v920, %v919
    %v944 = vpack.c.b16 %v922, %v921
    %v945 = vpack.c.b16 %v924, %v923
    %v946 = vpack.c.b16 %v926, %v925
    %v947 = vpack.c.b16 %v928, %v927
    %v948 = vpack.c.b16 %v930, %v929
    %v949 = vpack.c.b16 %v932, %v931
    %v950 = vpack.c.b16 %v934, %v933
    %967 = vmatprep.subr.bf16.mxu0 0
    %968 = vmatpush1.bf16.msra.mxu0 %v942
    %969 = vmatprep.subr.bf16.mxu0 0
    %970 = vmatpush1.bf16.msra.mxu0 %v941
    %971 = vmatprep.subr.bf16.mxu0 0
    %972 = vmatpush1.bf16.msra.mxu0 %v940
    %973 = vmatprep.subr.bf16.mxu0 0
    %974 = vmatpush1.bf16.msra.mxu0 %v939
    %975 = vmatprep.subr.bf16.mxu0 0
    %976 = vmatpush1.bf16.msra.mxu0 %v938
    %977 = vmatprep.subr.bf16.mxu0 0
    %978 = vmatpush1.bf16.msra.mxu0 %v937
    %979 = vmatprep.subr.bf16.mxu0 0
    %980 = vmatpush1.bf16.msra.mxu0 %v936
    %981 = vmatprep.subr.bf16.mxu0 0
    %982 = vmatpush1.bf16.msra.mxu0 %v935
    %983 = vmatprep.subr.bf16.mxu0 0
    %984 = vmatpush2.bf16.msra.mxu0 %v950
    %985 = vmatprep.subr.bf16.mxu0 0
    %986 = vmatpush2.bf16.msra.mxu0 %v949
    %987 = vmatprep.subr.bf16.mxu0 0
    %988 = vmatpush2.bf16.msra.mxu0 %v948
    %989 = vmatprep.subr.bf16.mxu0 0
    %990 = vmatpush2.bf16.msra.mxu0 %v947
    %991 = vmatprep.subr.bf16.mxu0 0
    %992 = vmatpush2.bf16.msra.mxu0 %v946
    %993 = vmatprep.subr.bf16.mxu0 0
    %994 = vmatpush2.bf16.msra.mxu0 %v945
    %995 = vmatprep.subr.bf16.mxu0 0
    %996 = vmatpush2.bf16.msra.mxu0 %v944
    %997 = vmatprep.subr.bf16.mxu0 0
    %998 = vmatpush2.bf16.msra.mxu0 %v943
    %999 = vmatprep.mubr.bf16.mxu0 %v831
    %1000 = vmatmul.mubr.bf16.gmra.mxu0 %v830
    %v1001 = vpop.f32.mrf.mxu0
    %v1002 = vadd.f32 %v869, %v1001
    %v1003 = vpop.f32.mrf.mxu0
    %v1004 = vpop.f32.mrf.mxu0
    %v1005 = vadd.f32 %v869, %v1004
    %v1006 = vpop.f32.mrf.mxu0
    %1007 = vdwg.mxu0
    %v1008 = vmax.f32 %v1002, 0.0
    %v1009 = vmax.f32 %v1005, 0.0
    %1010 = vst [vmem:[#allocation10] sm:$0xff] %v1008
    %1011 = vst [vmem:[#allocation10 + $0x8] sm:$0xff] %v1009
    // Predicated region
    $region46: #{tpu_custom_call.1} parent=1 // pred_check
      _
    $region47: #{tpu_custom_call.1} parent=1 // pred_check_branch
      %1013 = sbr.rel (0) target = $region49
    $region48: #{tpu_custom_call.1} parent=1 // pred_region
      %s1015 = ssub.s32 256, 256
      %1016 = vsyncadd [#allocation4], %s1015
      %s1017 = sshll.u32 [#allocation10], 4
      %s1018 = int_to_ptr.vmem [resolvable:$true] %s1017
      %1023 = dma.vmem_to_hbm [thread:$0]  %s1018, 256, %s7, [#allocation4], 128, 128, 8
    $region49: #{tpu_custom_call.1} parent=1 // pred_fallthru
      _
    // Predicated region
    $region50: #{tpu_custom_call.1} parent=1 // pred_check
      _
    $region51: #{tpu_custom_call.1} parent=1 // pred_check_branch
      %1025 = sbr.rel (0) target = $region53
    $region52: #{tpu_custom_call.1} parent=1 // pred_region
      %1026 = dma.done [#allocation4], 256
    $region53: #{tpu_custom_call.1} parent=1 // pred_fallthru
      _
    %1027 = vsyncpa [#allocation3], 1
    %1028 = vsyncpa [#allocation6], 1
    %1029 = vsyncpa [#allocation9], 1
    %1030 = vsyncpa [#allocation4], 1

</llo_original>
